<compile_context>
chip_gen: v5e
topology: v5e:2x2
jax: 0.10.0
libtpu: 0.0.40
codegen_flags: <defaults>
</compile_context>

<pallas_src>
import functools
from collections import OrderedDict

import jax
import jax.numpy as jnp
from jax.experimental import pallas as pl
from jax.experimental.pallas import tpu as pltpu

BN_EPS = 1e-5
LANE = 128

# EfficientNet-B0 stages: (expand_ratio, kernel, stride, in_ch, out_ch, num_layers)
B0_STAGES = [
    (1, 3, 1, 32, 16, 1),
    (6, 3, 2, 16, 24, 2),
    (6, 5, 2, 24, 40, 2),
    (6, 3, 2, 40, 80, 3),
    (6, 5, 1, 80, 112, 3),
    (6, 5, 2, 112, 192, 4),
    (6, 3, 1, 192, 320, 1),
]


# ------------------------------ small helpers -------------------------------

def _pad128(c):
    return ((c + LANE - 1) // LANE) * LANE


def _pad_axis(x, axis, target):
    cur = x.shape[axis]
    if cur == target:
        return x
    pads = [(0, 0)] * x.ndim
    pads[axis] = (0, target - cur)
    return jnp.pad(x, pads)


def _pick_block(n, candidates):
    for c in candidates:
        if n >= c and n % c == 0:
            return c
    return n  # full extent is always a legal block


def _largest_divisor_leq(n, m):
    m = max(1, min(n, m))
    for d in range(m, 0, -1):
        if n % d == 0:
            return d
    return 1


def _cp(ndims):
    # All grid axes used here index disjoint output tiles -> fully parallel
    # (megacore sharding).  64 MiB scoped VMEM (tiles chosen well under it).
    return pltpu.CompilerParams(
        dimension_semantics=("parallel",) * ndims,
        vmem_limit_bytes=64 * 1024 * 1024,
    )


def _sigmoid_f32(x):
    # Exact: sigmoid(x) = 0.5*tanh(0.5x) + 0.5 -> single EUP op per element
    # (vs exp + reciprocal = 2 EUP ops) and no approx-reciprocal drift.
    return 0.5 * jnp.tanh(0.5 * x) + 0.5


def _silu_f32(x):
    return x * _sigmoid_f32(x)


# ------------------------------- Pallas kernels ------------------------------

def _mm_kernel(x_ref, w_ref, shift_ref, o_ref, *, act):
    # (BM, K) @ (K, BN) on the MXU (bf16 in, f32 accumulate).
    # BN scale is pre-folded into w; epilogue = add shift (+ SiLU).
    y = jnp.dot(x_ref[...], w_ref[...], preferred_element_type=jnp.float32)
    y = y + shift_ref[...]
    if act == "silu":
        y = _silu_f32(y)
    o_ref[...] = y.astype(o_ref.dtype)


def _proj_kernel(x_ref, s_ref, w_ref, shift_ref, *rest, has_res):
    # Fused: (x * se_scale) @ Wproj + shift (+ residual).  Full output-N block
    # so the x*s rescale + bf16 recast is done exactly once per M tile.
    if has_res:
        res_ref, o_ref = rest
    else:
        (o_ref,) = rest
    xs = (x_ref[0].astype(jnp.float32) * s_ref[0]).astype(jnp.bfloat16)
    y = jnp.dot(xs, w_ref[...], preferred_element_type=jnp.float32)
    y = y + shift_ref[...]
    if has_res:
        y = y + res_ref[0].astype(jnp.float32)
    o_ref[0] = y.astype(o_ref.dtype)


def _se_kernel(p_ref, w1_ref, b1_ref, w2_ref, b2_ref, o_ref):
    # SE gate from the *pooled* tensor only: FC(SiLU) + FC(Sigmoid).
    pooled = p_ref[0]                                     # (1, Cp) f32
    h = jnp.dot(pooled, w1_ref[...], preferred_element_type=jnp.float32)
    h = _silu_f32(h + b1_ref[...])
    s = jnp.dot(h, w2_ref[...], preferred_element_type=jnp.float32)
    o_ref[0] = _sigmoid_f32(s + b2_ref[...])


def _dw_kernel(*args, k, stride, Ho, Wo, n_phase, row_chunk, inv_hw):
    # Depthwise conv + folded BN + SiLU, plus the SE average-pool as a second
    # output.  Per row chunk: load one contiguous full-width band per (dy[,px])
    # from VMEM, convert bf16->f32 once, slice the dx taps from that value.
    phase_refs = args[:n_phase]
    w_ref, shift_ref, o_ref, pool_ref = args[n_phase:]
    cb = o_ref.shape[-1]
    shift = shift_ref[...]                                # (1, cb) f32
    w = w_ref[...]                                        # (k*k, cb) f32
    pool_ref[...] = jnp.zeros_like(pool_ref)

    n_chunks = Ho // row_chunk
    rh = row_chunk

    @pl.loop(0, n_chunks)
    def _(chunk):
        r0 = pl.multiple_of(chunk * row_chunk, row_chunk)
        acc = jnp.zeros((rh, Wo, cb), jnp.float32)
        if stride == 1:
            for dy in range(k):
                band = phase_refs[0][0, pl.ds(r0 + dy, rh), :, :].astype(jnp.float32)
                for dx in range(k):
                    t = dy * k + dx
                    acc = acc + band[:, dx:dx + Wo, :] * w[t:t + 1, :]
        else:  # stride == 2: phase (dy%2, dx%2); one band per (dy, px) phase.
            for dy in range(k):
                for px in range(2):
                    dxs = [dx for dx in range(k) if dx % 2 == px]
                    if not dxs:
                        continue
                    pr = phase_refs[(dy % 2) * 2 + px]
                    band = pr[0, pl.ds(r0 + dy // 2, rh), :, :].astype(jnp.float32)
                    for dx in dxs:
                        t = dy * k + dx
                        c0 = dx // 2
                        acc = acc + band[:, c0:c0 + Wo, :] * w[t:t + 1, :]
        y = _silu_f32(acc + shift)
        o_ref[0, pl.ds(r0, rh), :, :] = y.astype(o_ref.dtype)
        chunk_sum = jnp.sum(jnp.sum(y, axis=0), axis=0, keepdims=True)   # (1, cb)
        pool_ref[0] = pool_ref[0] + chunk_sum

    pool_ref[...] = pool_ref[...] * inv_hw                # avg-pool for SE


# ------------------------------ Pallas wrappers -------------------------------

def matmul_bn_act(x, w, shift, act):
    # x: (M, K) bf16 ; w: (K, Np) bf16 (BN scale folded) ; shift: (1, Np) f32
    M, K = x.shape
    Np = w.shape[1]
    bm = _pick_block(M, (1024, 512, 256, 128))
    bn = _pick_block(Np, (512, 384, 256, 128))
    grid = (M // bm, Np // bn)
    return pl.pallas_call(
        functools.partial(_mm_kernel, act=act),
        out_shape=jax.ShapeDtypeStruct((M, Np), jnp.bfloat16),
        grid_spec=pltpu.PrefetchScalarGridSpec(
            num_scalar_prefetch=0, grid=grid,
            in_specs=[
                pl.BlockSpec((bm, K), lambda i, j: (i, 0)),
                pl.BlockSpec((K, bn), lambda i, j: (0, j)),
                pl.BlockSpec((1, bn), lambda i, j: (0, j)),
            ],
            out_specs=pl.BlockSpec((bm, bn), lambda i, j: (i, j))),
        compiler_params=_cp(2),
    )(x, w, shift)


def proj_matmul(x, s, w, shift, res=None):
    # Fused SE-scale + projection 1x1 conv + folded-BN shift (+ residual add).
    # x: (N, HW, K) bf16 ; s: (N, 1, K) f32 ; w: (K, Np) bf16 ; shift (1, Np) f32
    N, HW, K = x.shape
    Np = w.shape[1]
    bm = _pick_block(HW, (512, 256, 128))
    grid = (N, HW // bm)
    in_specs = [
        pl.BlockSpec((1, bm, K), lambda n, i: (n, i, 0)),
        pl.BlockSpec((1, 1, K), lambda n, i: (n, 0, 0)),
        pl.BlockSpec((K, Np), lambda n, i: (0, 0)),
        pl.BlockSpec((1, Np), lambda n, i: (0, 0)),
    ]
    args = [x, s, w, shift]
    if res is not None:
        in_specs.append(pl.BlockSpec((1, bm, Np), lambda n, i: (n, i, 0)))
        args.append(res)
    return pl.pallas_call(
        functools.partial(_proj_kernel, has_res=res is not None),
        out_shape=jax.ShapeDtypeStruct((N, HW, Np), jnp.bfloat16),
        grid_spec=pltpu.PrefetchScalarGridSpec(
            num_scalar_prefetch=0, grid=grid,
            in_specs=in_specs,
            out_specs=pl.BlockSpec((1, bm, Np), lambda n, i: (n, i, 0))),
        compiler_params=_cp(2),
    )(*args)


def se_gate(pooled, w1, b1, w2, b2):
    # pooled: (N, 1, Cp) f32 (from the depthwise kernel) -> gate (N, 1, Cp) f32.
    N, _, Cp = pooled.shape
    S = w1.shape[1]
    return pl.pallas_call(
        _se_kernel,
        out_shape=jax.ShapeDtypeStruct((N, 1, Cp), jnp.float32),
        grid_spec=pltpu.PrefetchScalarGridSpec(
            num_scalar_prefetch=0, grid=(N,),
            in_specs=[
                pl.BlockSpec((1, 1, Cp), lambda n: (n, 0, 0)),
                pl.BlockSpec((Cp, S), lambda n: (0, 0)),
                pl.BlockSpec((1, S), lambda n: (0, 0)),
                pl.BlockSpec((S, Cp), lambda n: (0, 0)),
                pl.BlockSpec((1, Cp), lambda n: (0, 0)),
            ],
            out_specs=pl.BlockSpec((1, 1, Cp), lambda n: (n, 0, 0))),
        compiler_params=_cp(1),
    )(pooled, w1, b1, w2, b2)


def depthwise_bn_act(x, w_taps, shift, k, stride):
    # x: (N, H, W, Cp) bf16, Cp % 128 == 0 ; w_taps: (k*k, Cp) f32 (scale folded)
    # Returns (activation (N,Ho,Wo,Cp) bf16, SE avg-pool (N,1,Cp) f32).
    N, H, W, Cp = x.shape
    pad = (k - 1) // 2
    Ho = (H + 2 * pad - k) // stride + 1
    Wo = (W + 2 * pad - k) // stride + 1
    # TODO(synk): halo pad + stride-2 phase split still materialise in HBM.
    xp = jnp.pad(x, ((0, 0), (pad, pad), (pad, pad), (0, 0)))
    if stride == 1:
        phases = [xp]
    else:
        if xp.shape[1] % 2:
            xp = jnp.pad(xp, ((0, 0), (0, 1), (0, 0), (0, 0)))
        if xp.shape[2] % 2:
            xp = jnp.pad(xp, ((0, 0), (0, 0), (0, 1), (0, 0)))
        phases = [xp[:, py::2, px::2, :] for py in range(2) for px in range(2)]

    cb = LANE
    grid = (N, Cp // cb)
    in_specs = []
    for ph in phases:
        hph, wph = ph.shape[1], ph.shape[2]
        in_specs.append(pl.BlockSpec((1, hph, wph, cb), lambda n, c: (n, 0, 0, c)))
    in_specs += [
        pl.BlockSpec((k * k, cb), lambda n, c: (0, c)),
        pl.BlockSpec((1, cb), lambda n, c: (0, c)),
    ]
    # f32 accumulator kept at ~8 vregs; row_chunk must divide Ho.
    row_budget = max(1, (8 * 1024) // (Wo * cb))
    row_chunk = _largest_divisor_leq(Ho, row_budget)
    kernel = functools.partial(_dw_kernel, k=k, stride=stride, Ho=Ho, Wo=Wo,
                               n_phase=len(phases), row_chunk=row_chunk,
                               inv_hw=1.0 / float(Ho * Wo))
    y, pooled = pl.pallas_call(
        kernel,
        out_shape=(jax.ShapeDtypeStruct((N, Ho, Wo, Cp), jnp.bfloat16),
                   jax.ShapeDtypeStruct((N, 1, Cp), jnp.float32)),
        grid_spec=pltpu.PrefetchScalarGridSpec(
            num_scalar_prefetch=0, grid=grid,
            in_specs=in_specs,
            out_specs=(pl.BlockSpec((1, Ho, Wo, cb), lambda n, c: (n, 0, 0, c)),
                       pl.BlockSpec((1, 1, cb), lambda n, c: (n, 0, c)))),
        compiler_params=_cp(2),
    )(*phases, w_taps, shift)
    return y, pooled


def stem_conv(x_nhwc, w_mat, shift):
    # 3x3/s2 stem conv.
    # TODO(synk): stem still uses a small JAX-side im2col (3 input channels,
    # K=27 -> negligible traffic); MBConv convs avoid im2col entirely.
    N, H, W, C = x_nhwc.shape
    k, stride, pad = 3, 2, 1
    Ho = (H + 2 * pad - k) // stride + 1
    Wo = (W + 2 * pad - k) // stride + 1
    xp = jnp.pad(x_nhwc, ((0, 0), (pad, pad), (pad, pad), (0, 0)))
    cols = [xp[:, dy:dy + stride * Ho:stride, dx:dx + stride * Wo:stride, :]
            for dy in range(k) for dx in range(k)]
    patches = jnp.concatenate(cols, axis=-1).reshape(N * Ho * Wo, k * k * C)
    y = matmul_bn_act(patches.astype(jnp.bfloat16), w_mat, shift, "silu")
    return y.reshape(N, Ho, Wo, w_mat.shape[1])


# ------------------------------ parameters ----------------------------------

class ParamGen:
    """Deterministic synthetic parameter generator (no checkpoint loading)."""

    def __init__(self, seed=0):
        self._key = jax.random.PRNGKey(seed)
        self._i = 0

    def _next(self):
        self._i += 1
        return jax.random.fold_in(self._key, self._i)

    def conv(self, cout, cin, kh, kw):
        fan_in = cin * kh * kw
        return jax.random.normal(self._next(), (cout, cin, kh, kw), jnp.float32) / jnp.sqrt(
            jnp.asarray(fan_in, jnp.float32))

    def bias(self, n):
        return 0.01 * jax.random.normal(self._next(), (n,), jnp.float32)

    def bn(self, n):
        gamma = 1.0 + 0.05 * jax.random.normal(self._next(), (n,), jnp.float32)
        beta = 0.05 * jax.random.normal(self._next(), (n,), jnp.float32)
        mean = 0.05 * jax.random.normal(self._next(), (n,), jnp.float32)
        var = 1.0 + 0.05 * jnp.abs(jax.random.normal(self._next(), (n,), jnp.float32))
        scale = gamma / jnp.sqrt(var + BN_EPS)   # fold eval-mode BN
        shift = beta - mean * scale
        return scale, shift


def make_mbconv_params(pg, expand, k, in_ch, out_ch):
    exp_ch = in_ch * expand
    sq_ch = max(1, in_ch // 4)     # torchvision: squeeze from block input chans
    p = {}
    if expand != 1:
        p["expand_w"] = pg.conv(exp_ch, in_ch, 1, 1)
        p["expand_bn"] = pg.bn(exp_ch)
    p["dw_w"] = pg.conv(exp_ch, 1, k, k)
    p["dw_bn"] = pg.bn(exp_ch)
    p["se_w1"] = pg.conv(sq_ch, exp_ch, 1, 1)
    p["se_b1"] = pg.bias(sq_ch)
    p["se_w2"] = pg.conv(exp_ch, sq_ch, 1, 1)
    p["se_b2"] = pg.bias(exp_ch)
    p["proj_w"] = pg.conv(out_ch, exp_ch, 1, 1)
    p["proj_bn"] = pg.bn(out_ch)
    return p


def make_efficientnet_b0_params(seed=0):
    pg = ParamGen(seed)
    params = {"layer0": {"w": pg.conv(32, 3, 3, 3), "bn": pg.bn(32)}, "blocks": []}
    for (expand, k, stride, in_ch, out_ch, n) in B0_STAGES:
        stage = []
        for j in range(n):
            bi = in_ch if j == 0 else out_ch
            s = stride if j == 0 else 1
            stage.append({"cfg": (expand, k, s, bi, out_ch),
                          "p": make_mbconv_params(pg, expand, k, bi, out_ch)})
        params["blocks"].append(stage)
    return params


# ---- one-time conversion to kernel layouts (transpose + BN-fold + pad) -----

def _prepare_block(p, cfg):
    expand, k, stride, in_ch, out_ch = cfg
    cin_p = _pad128(in_ch)
    cexp = in_ch * expand
    cexp_p = _pad128(cexp)
    cout_p = _pad128(out_ch)
    q = {"cfg": (expand, k, stride, in_ch, out_ch, cin_p, cexp_p, cout_p)}

    if expand != 1:
        sc, sh = p["expand_bn"]
        wm = p["expand_w"].reshape(cexp, in_ch).T * sc[None, :]     # (Cin, Cexp)
        q["expand_w"] = _pad_axis(_pad_axis(wm, 0, cin_p), 1, cexp_p).astype(jnp.bfloat16)
        q["expand_shift"] = _pad_axis(sh.reshape(1, cexp), 1, cexp_p)

    sc, sh = p["dw_bn"]
    wt = jnp.transpose(p["dw_w"][:, 0], (1, 2, 0)).reshape(k * k, cexp) * sc[None, :]
    q["dw_w"] = _pad_axis(wt, 1, cexp_p)                            # f32
    q["dw_shift"] = _pad_axis(sh.reshape(1, cexp), 1, cexp_p)

    S = p["se_w1"].shape[0]
    q["se_w1"] = _pad_axis(p["se_w1"].reshape(S, cexp).T, 0, cexp_p)   # (Cexp_p, S)
    q["se_b1"] = p["se_b1"].reshape(1, S)
    q["se_w2"] = _pad_axis(p["se_w2"].reshape(cexp, S).T, 1, cexp_p)   # (S, Cexp_p)
    q["se_b2"] = _pad_axis(p["se_b2"].reshape(1, cexp), 1, cexp_p)

    sc, sh = p["proj_bn"]
    wm = p["proj_w"].reshape(out_ch, cexp).T * sc[None, :]          # (Cexp, Cout)
    q["proj_w"] = _pad_axis(_pad_axis(wm, 0, cexp_p), 1, cout_p).astype(jnp.bfloat16)
    q["proj_shift"] = _pad_axis(sh.reshape(1, out_ch), 1, cout_p)
    return q


def prepare_efficientnet_b0(params):
    sc, sh = params["layer0"]["bn"]
    w = params["layer0"]["w"]                                       # (32,3,3,3)
    wm = jnp.transpose(w, (2, 3, 1, 0)).reshape(27, 32) * sc[None, :]
    prep = {
        "stem_w": _pad_axis(wm, 1, LANE).astype(jnp.bfloat16),      # (27, 128)
        "stem_shift": _pad_axis(sh.reshape(1, 32), 1, LANE),
        "blocks": [[_prepare_block(b["p"], b["cfg"]) for b in stage]
                   for stage in params["blocks"]],
    }
    return prep


# ------------------------------- forward ------------------------------------

def mbconv_forward(x, q):
    expand, k, stride, in_ch, out_ch, cin_p, cexp_p, cout_p = q["cfg"]
    N, H, W, _ = x.shape

    if expand != 1:
        h = matmul_bn_act(x.reshape(N * H * W, cin_p),
                          q["expand_w"], q["expand_shift"], "silu")
        h = h.reshape(N, H, W, cexp_p)
    else:
        h = x

    # Depthwise conv + BN + SiLU, with the SE average-pool fused as a second
    # output so the expanded activation crosses HBM only once.
    h, pooled = depthwise_bn_act(h, q["dw_w"], q["dw_shift"], k, stride)
    _, Ho, Wo, _ = h.shape

    s = se_gate(pooled, q["se_w1"], q["se_b1"], q["se_w2"], q["se_b2"])

    h2 = h.reshape(N, Ho * Wo, cexp_p)
    res = None
    if stride == 1 and in_ch == out_ch:
        # StochasticDepth is identity in eval mode -> plain residual, fused
        # into the projection matmul epilogue.
        res = x.reshape(N, Ho * Wo, cout_p)

    y = proj_matmul(h2, s, q["proj_w"], q["proj_shift"], res)
    return y.reshape(N, Ho, Wo, cout_p)


def efficientnet_forward(prep, x_nchw, fork_feat):
    # NCHW in/out (PyTorch convention); NHWC + 128-padded channels inside.
    x = jnp.transpose(x_nchw, (0, 2, 3, 1)).astype(jnp.float32)
    x = stem_conv(x, prep["stem_w"], prep["stem_shift"])
    out = OrderedDict()
    for i, stage in enumerate(prep["blocks"]):
        for blk in stage:
            x = mbconv_forward(x, blk)
        if i + 1 in fork_feat:
            out_ch = stage[-1]["cfg"][4]
            out[f"p{i + 1}"] = jnp.transpose(
                x[..., :out_ch], (0, 3, 1, 2)).astype(jnp.float32)
    return out


# --------------------------------- main --------------------------------------

if __name__ == "__main__":
    params = make_efficientnet_b0_params(seed=0)
    prep = prepare_efficientnet_b0(params)

    x = jax.random.normal(jax.random.PRNGKey(0), (2, 3, 32, 32), jnp.float32)
    fork_feat = (2, 3, 5, 7)   # RetinaNet feature taps (strides 4/8/16/32)

    feats = efficientnet_forward(prep, x, fork_feat)
    for v in feats.values():
        jax.block_until_ready(v)

    expected = {"p2": (2, 24, 8, 8), "p3": (2, 40, 4, 4),
                "p5": (2, 112, 2, 2), "p7": (2, 320, 1, 1)}
    for name, shp in expected.items():
        assert feats[name].shape == shp, (name, feats[name].shape, shp)
        assert bool(jnp.all(jnp.isfinite(feats[name])))

    print("KERNEL_OK")
</pallas_src>

<mosaic_0001>
module attributes {stable_mosaic.version = 11 : i64} {
  func.func @_mm_kernel(%arg0: i32, %arg1: i32, %arg2: memref<512x27xbf16, #tpu.memory_space<vmem>>, %arg3: memref<27x128xbf16, #tpu.memory_space<vmem>>, %arg4: memref<1x128xf32, #tpu.memory_space<vmem>>, %arg5: memref<512x128xbf16, #tpu.memory_space<vmem>>) attributes {dimension_semantics = [#tpu.dimension_semantics<parallel>, #tpu.dimension_semantics<parallel>], iteration_bounds = array<i64: 1, 1>, scalar_prefetch = 0 : i64, scratch_operands = 0 : i64, tpu.core_type = #tpu.core_type<tc>, window_params = [{transform_indices = @transform_0, window_bounds = array<i64: 512, 27>}, {transform_indices = @transform_1, window_bounds = array<i64: 27, 128>}, {transform_indices = @transform_2, window_bounds = array<i64: 1, 128>}, {transform_indices = @transform_3, window_bounds = array<i64: 512, 128>}]} {
    %c0 = arith.constant 0 : index
    %c0_0 = arith.constant 0 : index
    %0 = vector.load %arg2[%c0, %c0_0] : memref<512x27xbf16, #tpu.memory_space<vmem>>, vector<512x27xbf16>
    %c0_1 = arith.constant 0 : index
    %c0_2 = arith.constant 0 : index
    %1 = vector.load %arg3[%c0_1, %c0_2] : memref<27x128xbf16, #tpu.memory_space<vmem>>, vector<27x128xbf16>
    %cst = arith.constant dense<0.000000e+00> : vector<512x128xf32>
    %2 = tpu.matmul %0, %1, %cst {dimension_numbers = #tpu.dot_dimension_numbers<[1], [0], [0], [1], [0, 0, 1, 1], [], []>} : vector<512x27xbf16>, vector<27x128xbf16>, vector<512x128xf32> -> vector<512x128xf32>
    %c0_3 = arith.constant 0 : index
    %c0_4 = arith.constant 0 : index
    %3 = vector.load %arg4[%c0_3, %c0_4] : memref<1x128xf32, #tpu.memory_space<vmem>>, vector<1x128xf32>
    %4 = vector.broadcast %3 : vector<1x128xf32> to vector<512x128xf32>
    %5 = arith.addf %2, %4 : vector<512x128xf32>
    %cst_5 = arith.constant 5.000000e-01 : f32
    %6 = vector.broadcast %cst_5 : f32 to vector<512x128xf32>
    %7 = arith.mulf %6, %5 : vector<512x128xf32>
    %8 = math.tanh %7 : vector<512x128xf32>
    %cst_6 = arith.constant 5.000000e-01 : f32
    %9 = vector.broadcast %cst_6 : f32 to vector<512x128xf32>
    %10 = arith.mulf %9, %8 : vector<512x128xf32>
    %cst_7 = arith.constant 5.000000e-01 : f32
    %11 = vector.broadcast %cst_7 : f32 to vector<512x128xf32>
    %12 = arith.addf %10, %11 : vector<512x128xf32>
    %13 = arith.mulf %5, %12 : vector<512x128xf32>
    %14 = arith.truncf %13 : vector<512x128xf32> to vector<512x128xbf16>
    %c0_8 = arith.constant 0 : index
    %c0_9 = arith.constant 0 : index
    %15 = vector.load %arg5[%c0_8, %c0_9] : memref<512x128xbf16, #tpu.memory_space<vmem>>, vector<512x128xbf16>
    tpu.vector_store %arg5[%c0_8, %c0_9], %14 {strides = array<i32>} : memref<512x128xbf16, #tpu.memory_space<vmem>>, vector<512x128xbf16>,
    return
  }
  func.func @transform_0(%arg0: i32, %arg1: i32) -> (i32, i32) {
    %c0_i32 = arith.constant 0 : i32
    %c0_i32_0 = arith.constant 0 : i32
    return %arg0, %c0_i32 : i32, i32
  }
  func.func @transform_1(%arg0: i32, %arg1: i32) -> (i32, i32) {
    %c0_i32 = arith.constant 0 : i32
    %c0_i32_0 = arith.constant 0 : i32
    return %c0_i32, %arg1 : i32, i32
  }
  func.func @transform_2(%arg0: i32, %arg1: i32) -> (i32, i32) {
    %c0_i32 = arith.constant 0 : i32
    %c0_i32_0 = arith.constant 0 : i32
    return %c0_i32, %arg1 : i32, i32
  }
  func.func @transform_3(%arg0: i32, %arg1: i32) -> (i32, i32) {
    %c0_i32 = arith.constant 0 : i32
    return %arg0, %arg1 : i32, i32
  }
}

</mosaic_0001>

<llo_original>
// kernel: tpu_custom_call.1
$region0: #{tpu_custom_call.1}
  #allocation0 [shape = 'u32[]', space=smem, size = 0x4, offset = 0x4, fixed_abs, tag = 'smem constant byte address 0x4 - core index']
  #allocation1 [shape = 'u32[72,128]{1,0:T(1,128)}', space=vmem, size = 0x9000, scoped, tag = 'internal scratch']
  %s0 = inlined_call_operand.vmem [shape: bf16[512,27], index: 0, kind: input, shape index: {}]
  %s1 = inlined_call_operand.vmem [shape: bf16[27,128], index: 1, kind: input, shape index: {}]
  %s2 = inlined_call_operand.vmem [shape: f32[1,128], index: 2, kind: input, shape index: {}]
  %s3 = inlined_call_operand.hbm [shape: bf16[512,128], index: 3, kind: output, shape index: {}]
  %s4 = sld [smem:[#allocation0]]
  $region22: #{tpu_custom_call.1} parent=0
    _
  %s6 = ssub.s32 1, %s4
  %s7 = scalar_select 0, %s6, %s4
  $region1: #{tpu_custom_call.1} parent=0
    #allocation2 [shape = 'u8[131072]{0}', space=vmem, size = 0x20000, scoped, tag = 'output window, operand 0, single buffered']
    #allocation3 [shape = 's32[1]{0}', space=sflag, size = 0x4, scoped, tag = 'scoped memory for tpu_custom_call.1']
    %8 = vsyncpa [#allocation3], 0
    // Predicated region
    $region2: #{tpu_custom_call.1} parent=1 // pred_check
      _
    $region3: #{tpu_custom_call.1} parent=1 // pred_check_branch
      %10 = sbr.rel (0) target = $region5
    $region4: #{tpu_custom_call.1} parent=1 // pred_region
      _
    $region5: #{tpu_custom_call.1} parent=1 // pred_fallthru
      _
    // Predicated region
    $region6: #{tpu_custom_call.1} parent=1 // pred_check
      _
    $region7: #{tpu_custom_call.1} parent=1 // pred_check_branch
      %12 = sbr.rel (0) target = $region9
    $region8: #{tpu_custom_call.1} parent=1 // pred_region
      _
    $region9: #{tpu_custom_call.1} parent=1 // pred_fallthru
      _
    // Predicated region
    $region10: #{tpu_custom_call.1} parent=1 // pred_check
      _
    $region11: #{tpu_custom_call.1} parent=1 // pred_check_branch
      %14 = sbr.rel (0) target = $region13
    $region12: #{tpu_custom_call.1} parent=1 // pred_region
      _
    $region13: #{tpu_custom_call.1} parent=1 // pred_fallthru
      _
    %v16 = vld [vmem:[%s0] sm:$0xf]
    %v17 = vld [vmem:[%s0 + $0x4] sm:$0xf]
    %v18 = vld [vmem:[%s0 + $0x8] sm:$0xf]
    %v19 = vld [vmem:[%s0 + $0xc] sm:$0xf]
    %v20 = vld [vmem:[%s0 + $0x10] sm:$0xf]
    %v21 = vld [vmem:[%s0 + $0x14] sm:$0xf]
    %v22 = vld [vmem:[%s0 + $0x18] sm:$0xf]
    %v23 = vld [vmem:[%s0 + $0x1c] sm:$0xf]
    %v24 = vld [vmem:[%s0 + $0x20] sm:$0xf]
    %v25 = vld [vmem:[%s0 + $0x24] sm:$0xf]
    %v26 = vld [vmem:[%s0 + $0x28] sm:$0xf]
    %v27 = vld [vmem:[%s0 + $0x2c] sm:$0xf]
    %v28 = vld [vmem:[%s0 + $0x30] sm:$0xf]
    %v29 = vld [vmem:[%s0 + $0x34] sm:$0xf]
    %v30 = vld [vmem:[%s0 + $0x38] sm:$0xf]
    %v31 = vld [vmem:[%s0 + $0x3c] sm:$0xf]
    %v32 = vld [vmem:[%s0 + $0x40] sm:$0xf]
    %v33 = vld [vmem:[%s0 + $0x44] sm:$0xf]
    %v34 = vld [vmem:[%s0 + $0x48] sm:$0xf]
    %v35 = vld [vmem:[%s0 + $0x4c] sm:$0xf]
    %v36 = vld [vmem:[%s0 + $0x50] sm:$0xf]
    %v37 = vld [vmem:[%s0 + $0x54] sm:$0xf]
    %v38 = vld [vmem:[%s0 + $0x58] sm:$0xf]
    %v39 = vld [vmem:[%s0 + $0x5c] sm:$0xf]
    %v40 = vld [vmem:[%s0 + $0x60] sm:$0xf]
    %v41 = vld [vmem:[%s0 + $0x64] sm:$0xf]
    %v42 = vld [vmem:[%s0 + $0x68] sm:$0xf]
    %v43 = vld [vmem:[%s0 + $0x6c] sm:$0xf]
    %v44 = vld [vmem:[%s0 + $0x70] sm:$0xf]
    %v45 = vld [vmem:[%s0 + $0x74] sm:$0xf]
    %v46 = vld [vmem:[%s0 + $0x78] sm:$0xf]
    %v47 = vld [vmem:[%s0 + $0x7c] sm:$0xf]
    %v48 = vld [vmem:[%s0 + $0x80] sm:$0xf]
    %v49 = vld [vmem:[%s0 + $0x84] sm:$0xf]
    %v50 = vld [vmem:[%s0 + $0x88] sm:$0xf]
    %v51 = vld [vmem:[%s0 + $0x8c] sm:$0xf]
    %v52 = vld [vmem:[%s0 + $0x90] sm:$0xf]
    %v53 = vld [vmem:[%s0 + $0x94] sm:$0xf]
    %v54 = vld [vmem:[%s0 + $0x98] sm:$0xf]
    %v55 = vld [vmem:[%s0 + $0x9c] sm:$0xf]
    %v56 = vld [vmem:[%s0 + $0xa0] sm:$0xf]
    %v57 = vld [vmem:[%s0 + $0xa4] sm:$0xf]
    %v58 = vld [vmem:[%s0 + $0xa8] sm:$0xf]
    %v59 = vld [vmem:[%s0 + $0xac] sm:$0xf]
    %v60 = vld [vmem:[%s0 + $0xb0] sm:$0xf]
    %v61 = vld [vmem:[%s0 + $0xb4] sm:$0xf]
    %v62 = vld [vmem:[%s0 + $0xb8] sm:$0xf]
    %v63 = vld [vmem:[%s0 + $0xbc] sm:$0xf]
    %v64 = vld [vmem:[%s0 + $0xc0] sm:$0xf]
    %v65 = vld [vmem:[%s0 + $0xc4] sm:$0xf]
    %v66 = vld [vmem:[%s0 + $0xc8] sm:$0xf]
    %v67 = vld [vmem:[%s0 + $0xcc] sm:$0xf]
    %v68 = vld [vmem:[%s0 + $0xd0] sm:$0xf]
    %v69 = vld [vmem:[%s0 + $0xd4] sm:$0xf]
    %v70 = vld [vmem:[%s0 + $0xd8] sm:$0xf]
    %v71 = vld [vmem:[%s0 + $0xdc] sm:$0xf]
    %v72 = vld [vmem:[%s0 + $0xe0] sm:$0xf]
    %v73 = vld [vmem:[%s0 + $0xe4] sm:$0xf]
    %v74 = vld [vmem:[%s0 + $0xe8] sm:$0xf]
    %v75 = vld [vmem:[%s0 + $0xec] sm:$0xf]
    %v76 = vld [vmem:[%s0 + $0xf0] sm:$0xf]
    %v77 = vld [vmem:[%s0 + $0xf4] sm:$0xf]
    %v78 = vld [vmem:[%s0 + $0xf8] sm:$0xf]
    %v79 = vld [vmem:[%s0 + $0xfc] sm:$0xf]
    %v80 = vld [vmem:[%s1] sm:$0xf]
    %v81 = vld [vmem:[%s1 + $0x4] sm:$0xf]
    %v82 = vld [vmem:[%s1 + $0x8] sm:$0xf]
    %v83 = vld [vmem:[%s1 + $0xc] sm:$0x3]
    %v84 = vld [vmem:[%s2] sm:$0x1]
    %v86 = vperm.slane %v84, 0
    %v152 = vunpack.c.l.b16 %v16
    %v153 = vunpack.c.l.b16 %v17
    %v154 = vunpack.c.l.b16 %v18
    %v155 = vunpack.c.l.b16 %v19
    %v156 = vunpack.c.l.b16 %v20
    %v157 = vunpack.c.l.b16 %v21
    %v158 = vunpack.c.l.b16 %v22
    %v159 = vunpack.c.l.b16 %v23
    %v160 = vunpack.c.l.b16 %v24
    %v161 = vunpack.c.l.b16 %v25
    %v162 = vunpack.c.l.b16 %v26
    %v163 = vunpack.c.l.b16 %v27
    %v164 = vunpack.c.l.b16 %v28
    %v165 = vunpack.c.l.b16 %v29
    %v166 = vunpack.c.l.b16 %v30
    %v167 = vunpack.c.l.b16 %v31
    %v168 = vunpack.c.l.b16 %v32
    %v169 = vunpack.c.l.b16 %v33
    %v170 = vunpack.c.l.b16 %v34
    %v171 = vunpack.c.l.b16 %v35
    %v172 = vunpack.c.l.b16 %v36
    %v173 = vunpack.c.l.b16 %v37
    %v174 = vunpack.c.l.b16 %v38
    %v175 = vunpack.c.l.b16 %v39
    %v176 = vunpack.c.l.b16 %v40
    %v177 = vunpack.c.l.b16 %v41
    %v178 = vunpack.c.l.b16 %v42
    %v179 = vunpack.c.l.b16 %v43
    %v180 = vunpack.c.l.b16 %v44
    %v181 = vunpack.c.l.b16 %v45
    %v182 = vunpack.c.l.b16 %v46
    %v183 = vunpack.c.l.b16 %v47
    %v184 = vunpack.c.l.b16 %v48
    %v185 = vunpack.c.l.b16 %v49
    %v186 = vunpack.c.l.b16 %v50
    %v187 = vunpack.c.l.b16 %v51
    %v188 = vunpack.c.l.b16 %v52
    %v189 = vunpack.c.l.b16 %v53
    %v190 = vunpack.c.l.b16 %v54
    %v191 = vunpack.c.l.b16 %v55
    %v192 = vunpack.c.l.b16 %v56
    %v193 = vunpack.c.l.b16 %v57
    %v194 = vunpack.c.l.b16 %v58
    %v195 = vunpack.c.l.b16 %v59
    %v196 = vunpack.c.l.b16 %v60
    %v197 = vunpack.c.l.b16 %v61
    %v198 = vunpack.c.l.b16 %v62
    %v199 = vunpack.c.l.b16 %v63
    %v200 = vunpack.c.l.b16 %v64
    %v201 = vunpack.c.l.b16 %v65
    %v202 = vunpack.c.l.b16 %v66
    %v203 = vunpack.c.l.b16 %v67
    %v204 = vunpack.c.l.b16 %v68
    %v205 = vunpack.c.l.b16 %v69
    %v206 = vunpack.c.l.b16 %v70
    %v207 = vunpack.c.l.b16 %v71
    %v208 = vunpack.c.l.b16 %v72
    %v209 = vunpack.c.l.b16 %v73
    %v210 = vunpack.c.l.b16 %v74
    %v211 = vunpack.c.l.b16 %v75
    %v212 = vunpack.c.l.b16 %v76
    %v213 = vunpack.c.l.b16 %v77
    %v214 = vunpack.c.l.b16 %v78
    %v215 = vunpack.c.l.b16 %v79
    %v216 = vpack.c.b16 %v153, %v152
    %v217 = vpack.c.b16 %v155, %v154
    %v218 = vpack.c.b16 %v157, %v156
    %v219 = vpack.c.b16 %v159, %v158
    %v220 = vpack.c.b16 %v161, %v160
    %v221 = vpack.c.b16 %v163, %v162
    %v222 = vpack.c.b16 %v165, %v164
    %v223 = vpack.c.b16 %v167, %v166
    %v224 = vpack.c.b16 %v169, %v168
    %v225 = vpack.c.b16 %v171, %v170
    %v226 = vpack.c.b16 %v173, %v172
    %v227 = vpack.c.b16 %v175, %v174
    %v228 = vpack.c.b16 %v177, %v176
    %v229 = vpack.c.b16 %v179, %v178
    %v230 = vpack.c.b16 %v181, %v180
    %v231 = vpack.c.b16 %v183, %v182
    %v232 = vpack.c.b16 %v185, %v184
    %v233 = vpack.c.b16 %v187, %v186
    %v234 = vpack.c.b16 %v189, %v188
    %v235 = vpack.c.b16 %v191, %v190
    %v236 = vpack.c.b16 %v193, %v192
    %v237 = vpack.c.b16 %v195, %v194
    %v238 = vpack.c.b16 %v197, %v196
    %v239 = vpack.c.b16 %v199, %v198
    %v240 = vpack.c.b16 %v201, %v200
    %v241 = vpack.c.b16 %v203, %v202
    %v242 = vpack.c.b16 %v205, %v204
    %v243 = vpack.c.b16 %v207, %v206
    %v244 = vpack.c.b16 %v209, %v208
    %v245 = vpack.c.b16 %v211, %v210
    %v246 = vpack.c.b16 %v213, %v212
    %v247 = vpack.c.b16 %v215, %v214
    %v252 = vunpack.c.l.b16 %v80
    %v253 = vunpack.c.l.b16 %v81
    %v254 = vunpack.c.l.b16 %v82
    %v255 = vunpack.c.l.b16 %v83
    %v256 = vpack.c.b16 %v253, %v252
    %v257 = vpack.c.b16 %v255, %v254
    %vm259 = vcmask 220160
    %v261 = vsel %vm259, %v216, 0
    %v264 = vsel %vm259, %v217, 0
    %v267 = vsel %vm259, %v218, 0
    %v270 = vsel %vm259, %v219, 0
    %v273 = vsel %vm259, %v220, 0
    %v276 = vsel %vm259, %v221, 0
    %v279 = vsel %vm259, %v222, 0
    %v282 = vsel %vm259, %v223, 0
    %v285 = vsel %vm259, %v224, 0
    %v288 = vsel %vm259, %v225, 0
    %v291 = vsel %vm259, %v226, 0
    %v294 = vsel %vm259, %v227, 0
    %v297 = vsel %vm259, %v228, 0
    %v300 = vsel %vm259, %v229, 0
    %v303 = vsel %vm259, %v230, 0
    %v306 = vsel %vm259, %v231, 0
    %v309 = vsel %vm259, %v232, 0
    %v312 = vsel %vm259, %v233, 0
    %v315 = vsel %vm259, %v234, 0
    %v318 = vsel %vm259, %v235, 0
    %v321 = vsel %vm259, %v236, 0
    %v324 = vsel %vm259, %v237, 0
    %v327 = vsel %vm259, %v238, 0
    %v330 = vsel %vm259, %v239, 0
    %v333 = vsel %vm259, %v240, 0
    %v336 = vsel %vm259, %v241, 0
    %v339 = vsel %vm259, %v242, 0
    %v342 = vsel %vm259, %v243, 0
    %v345 = vsel %vm259, %v244, 0
    %v348 = vsel %vm259, %v245, 0
    %v351 = vsel %vm259, %v246, 0
    %v354 = vsel %vm259, %v247, 0
    %vm356 = vcmask 1044480
    %vm357 = vcmask 1045504
    %v358 = vsel %vm356, 4294967295, 65535
    %v359 = vsel %vm357, %v358, 0
    %v361 = vand.u32 %v257, %v359
    %363 = vmatpush.bf16.msra.mxu0 0
    %364 = vmatpush.bf16.msra.mxu0 0
    %365 = vmatpush.bf16.msra.mxu0 0
    %366 = vmatpush.bf16.msra.mxu0 0
    %367 = vmatpush.bf16.msra.mxu0 0
    %368 = vmatpush.bf16.msra.mxu0 0
    %369 = vmatpush.bf16.msra.mxu0 %v361
    %370 = vmatpush.bf16.msra.mxu0 %v256
    %371 = vmatmul.bf16.gmra.mxu0 %v261
    %v372 = vpop.f32.mrf.mxu0
    %v373 = vadd.f32 %v86, %v372
    %v374 = vpop.f32.mrf.mxu0
    %v375 = vadd.f32 %v86, %v374
    %376 = vmatmul.bf16.gmra.mxu0 %v264
    %v377 = vpop.f32.mrf.mxu0
    %v378 = vadd.f32 %v86, %v377
    %v379 = vpop.f32.mrf.mxu0
    %v380 = vadd.f32 %v86, %v379
    %381 = vmatmul.bf16.gmra.mxu0 %v267
    %v382 = vpop.f32.mrf.mxu0
    %v383 = vadd.f32 %v86, %v382
    %v384 = vpop.f32.mrf.mxu0
    %v385 = vadd.f32 %v86, %v384
    %386 = vmatmul.bf16.gmra.mxu0 %v270
    %v387 = vpop.f32.mrf.mxu0
    %v388 = vadd.f32 %v86, %v387
    %v389 = vpop.f32.mrf.mxu0
    %v390 = vadd.f32 %v86, %v389
    %391 = vmatmul.bf16.gmra.mxu0 %v273
    %v392 = vpop.f32.mrf.mxu0
    %v393 = vadd.f32 %v86, %v392
    %v394 = vpop.f32.mrf.mxu0
    %v395 = vadd.f32 %v86, %v394
    %396 = vmatmul.bf16.gmra.mxu0 %v276
    %v397 = vpop.f32.mrf.mxu0
    %v398 = vadd.f32 %v86, %v397
    %v399 = vpop.f32.mrf.mxu0
    %v400 = vadd.f32 %v86, %v399
    %401 = vmatmul.bf16.gmra.mxu0 %v279
    %v402 = vpop.f32.mrf.mxu0
    %v403 = vadd.f32 %v86, %v402
    %v404 = vpop.f32.mrf.mxu0
    %v405 = vadd.f32 %v86, %v404
    %406 = vmatmul.bf16.gmra.mxu0 %v282
    %v407 = vpop.f32.mrf.mxu0
    %v408 = vadd.f32 %v86, %v407
    %v409 = vpop.f32.mrf.mxu0
    %v410 = vadd.f32 %v86, %v409
    %411 = vmatmul.bf16.gmra.mxu0 %v285
    %v412 = vpop.f32.mrf.mxu0
    %v413 = vadd.f32 %v86, %v412
    %v414 = vpop.f32.mrf.mxu0
    %v415 = vadd.f32 %v86, %v414
    %416 = vmatmul.bf16.gmra.mxu0 %v288
    %v417 = vpop.f32.mrf.mxu0
    %v418 = vadd.f32 %v86, %v417
    %v419 = vpop.f32.mrf.mxu0
    %v420 = vadd.f32 %v86, %v419
    %421 = vmatmul.bf16.gmra.mxu0 %v291
    %v422 = vpop.f32.mrf.mxu0
    %v423 = vadd.f32 %v86, %v422
    %v424 = vpop.f32.mrf.mxu0
    %v425 = vadd.f32 %v86, %v424
    %426 = vmatmul.bf16.gmra.mxu0 %v294
    %v427 = vpop.f32.mrf.mxu0
    %v428 = vadd.f32 %v86, %v427
    %v429 = vpop.f32.mrf.mxu0
    %v430 = vadd.f32 %v86, %v429
    %431 = vmatmul.bf16.gmra.mxu0 %v297
    %v432 = vpop.f32.mrf.mxu0
    %v433 = vadd.f32 %v86, %v432
    %v434 = vpop.f32.mrf.mxu0
    %v435 = vadd.f32 %v86, %v434
    %436 = vmatmul.bf16.gmra.mxu0 %v300
    %v437 = vpop.f32.mrf.mxu0
    %v438 = vadd.f32 %v86, %v437
    %v439 = vpop.f32.mrf.mxu0
    %v440 = vadd.f32 %v86, %v439
    %441 = vmatmul.bf16.gmra.mxu0 %v303
    %v442 = vpop.f32.mrf.mxu0
    %v443 = vadd.f32 %v86, %v442
    %v444 = vpop.f32.mrf.mxu0
    %v445 = vadd.f32 %v86, %v444
    %446 = vmatmul.bf16.gmra.mxu0 %v306
    %v447 = vpop.f32.mrf.mxu0
    %v448 = vadd.f32 %v86, %v447
    %v449 = vpop.f32.mrf.mxu0
    %v450 = vadd.f32 %v86, %v449
    %451 = vmatmul.bf16.gmra.mxu0 %v309
    %v452 = vpop.f32.mrf.mxu0
    %v453 = vadd.f32 %v86, %v452
    %v454 = vpop.f32.mrf.mxu0
    %v455 = vadd.f32 %v86, %v454
    %456 = vmatmul.bf16.gmra.mxu0 %v312
    %v457 = vpop.f32.mrf.mxu0
    %v458 = vadd.f32 %v86, %v457
    %v459 = vpop.f32.mrf.mxu0
    %v460 = vadd.f32 %v86, %v459
    %461 = vmatmul.bf16.gmra.mxu0 %v315
    %v462 = vpop.f32.mrf.mxu0
    %v463 = vadd.f32 %v86, %v462
    %v464 = vpop.f32.mrf.mxu0
    %v465 = vadd.f32 %v86, %v464
    %466 = vmatmul.bf16.gmra.mxu0 %v318
    %v467 = vpop.f32.mrf.mxu0
    %v468 = vadd.f32 %v86, %v467
    %v469 = vpop.f32.mrf.mxu0
    %v470 = vadd.f32 %v86, %v469
    %471 = vmatmul.bf16.gmra.mxu0 %v321
    %v472 = vpop.f32.mrf.mxu0
    %v473 = vadd.f32 %v86, %v472
    %v474 = vpop.f32.mrf.mxu0
    %v475 = vadd.f32 %v86, %v474
    %476 = vmatmul.bf16.gmra.mxu0 %v324
    %v477 = vpop.f32.mrf.mxu0
    %v478 = vadd.f32 %v86, %v477
    %v479 = vpop.f32.mrf.mxu0
    %v480 = vadd.f32 %v86, %v479
    %481 = vmatmul.bf16.gmra.mxu0 %v327
    %v482 = vpop.f32.mrf.mxu0
    %v483 = vadd.f32 %v86, %v482
    %v484 = vpop.f32.mrf.mxu0
    %v485 = vadd.f32 %v86, %v484
    %486 = vmatmul.bf16.gmra.mxu0 %v330
    %v487 = vpop.f32.mrf.mxu0
    %v488 = vadd.f32 %v86, %v487
    %v489 = vpop.f32.mrf.mxu0
    %v490 = vadd.f32 %v86, %v489
    %491 = vmatmul.bf16.gmra.mxu0 %v333
    %v492 = vpop.f32.mrf.mxu0
    %v493 = vadd.f32 %v86, %v492
    %v494 = vpop.f32.mrf.mxu0
    %v495 = vadd.f32 %v86, %v494
    %496 = vmatmul.bf16.gmra.mxu0 %v336
    %v497 = vpop.f32.mrf.mxu0
    %v498 = vadd.f32 %v86, %v497
    %v499 = vpop.f32.mrf.mxu0
    %v500 = vadd.f32 %v86, %v499
    %501 = vmatmul.bf16.gmra.mxu0 %v339
    %v502 = vpop.f32.mrf.mxu0
    %v503 = vadd.f32 %v86, %v502
    %v504 = vpop.f32.mrf.mxu0
    %v505 = vadd.f32 %v86, %v504
    %506 = vmatmul.bf16.gmra.mxu0 %v342
    %v507 = vpop.f32.mrf.mxu0
    %v508 = vadd.f32 %v86, %v507
    %v509 = vpop.f32.mrf.mxu0
    %v510 = vadd.f32 %v86, %v509
    %511 = vmatmul.bf16.gmra.mxu0 %v345
    %v512 = vpop.f32.mrf.mxu0
    %v513 = vadd.f32 %v86, %v512
    %v514 = vpop.f32.mrf.mxu0
    %v515 = vadd.f32 %v86, %v514
    %516 = vmatmul.bf16.gmra.mxu0 %v348
    %v517 = vpop.f32.mrf.mxu0
    %v518 = vadd.f32 %v86, %v517
    %v519 = vpop.f32.mrf.mxu0
    %v520 = vadd.f32 %v86, %v519
    %521 = vmatmul.bf16.gmra.mxu0 %v351
    %v522 = vpop.f32.mrf.mxu0
    %v523 = vadd.f32 %v86, %v522
    %v524 = vpop.f32.mrf.mxu0
    %v525 = vadd.f32 %v86, %v524
    %526 = vmatmul.bf16.gmra.mxu0 %v354
    %v527 = vpop.f32.mrf.mxu0
    %v528 = vadd.f32 %v86, %v527
    %v529 = vpop.f32.mrf.mxu0
    %v530 = vadd.f32 %v86, %v529
    %531 = vdwg.mxu0
    %v532 = vmul.f32 %v373, 0.5
    %v533 = vmul.f32 %v375, 0.5
    %v534 = vmul.f32 %v378, 0.5
    %v535 = vmul.f32 %v380, 0.5
    %v536 = vmul.f32 %v383, 0.5
    %v537 = vmul.f32 %v385, 0.5
    %v538 = vmul.f32 %v388, 0.5
    %v539 = vmul.f32 %v390, 0.5
    %v540 = vmul.f32 %v393, 0.5
    %v541 = vmul.f32 %v395, 0.5
    %v542 = vmul.f32 %v398, 0.5
    %v543 = vmul.f32 %v400, 0.5
    %v544 = vmul.f32 %v403, 0.5
    %v545 = vmul.f32 %v405, 0.5
    %v546 = vmul.f32 %v408, 0.5
    %v547 = vmul.f32 %v410, 0.5
    %v548 = vmul.f32 %v413, 0.5
    %v549 = vmul.f32 %v415, 0.5
    %v550 = vmul.f32 %v418, 0.5
    %v551 = vmul.f32 %v420, 0.5
    %v552 = vmul.f32 %v423, 0.5
    %v553 = vmul.f32 %v425, 0.5
    %v554 = vmul.f32 %v428, 0.5
    %v555 = vmul.f32 %v430, 0.5
    %v556 = vmul.f32 %v433, 0.5
    %v557 = vmul.f32 %v435, 0.5
    %v558 = vmul.f32 %v438, 0.5
    %v559 = vmul.f32 %v440, 0.5
    %v560 = vmul.f32 %v443, 0.5
    %v561 = vmul.f32 %v445, 0.5
    %v562 = vmul.f32 %v448, 0.5
    %v563 = vmul.f32 %v450, 0.5
    %v564 = vmul.f32 %v453, 0.5
    %v565 = vmul.f32 %v455, 0.5
    %v566 = vmul.f32 %v458, 0.5
    %v567 = vmul.f32 %v460, 0.5
    %v568 = vmul.f32 %v463, 0.5
    %v569 = vmul.f32 %v465, 0.5
    %v570 = vmul.f32 %v468, 0.5
    %v571 = vmul.f32 %v470, 0.5
    %v572 = vmul.f32 %v473, 0.5
    %v573 = vmul.f32 %v475, 0.5
    %v574 = vmul.f32 %v478, 0.5
    %v575 = vmul.f32 %v480, 0.5
    %v576 = vmul.f32 %v483, 0.5
    %v577 = vmul.f32 %v485, 0.5
    %v578 = vmul.f32 %v488, 0.5
    %v579 = vmul.f32 %v490, 0.5
    %v580 = vmul.f32 %v493, 0.5
    %v581 = vmul.f32 %v495, 0.5
    %v582 = vmul.f32 %v498, 0.5
    %v583 = vmul.f32 %v500, 0.5
    %v584 = vmul.f32 %v503, 0.5
    %v585 = vmul.f32 %v505, 0.5
    %v586 = vmul.f32 %v508, 0.5
    %v587 = vmul.f32 %v510, 0.5
    %v588 = vmul.f32 %v513, 0.5
    %v589 = vmul.f32 %v515, 0.5
    %v590 = vmul.f32 %v518, 0.5
    %v591 = vmul.f32 %v520, 0.5
    %v592 = vmul.f32 %v523, 0.5
    %v593 = vmul.f32 %v525, 0.5
    %v594 = vmul.f32 %v528, 0.5
    %v595 = vmul.f32 %v530, 0.5
    %v596 = vtanh.pop %v532
    %v597 = vtanh.pop %v533
    %v598 = vtanh.pop %v534
    %v599 = vtanh.pop %v535
    %v600 = vtanh.pop %v536
    %v601 = vtanh.pop %v537
    %v602 = vtanh.pop %v538
    %v603 = vtanh.pop %v539
    %v604 = vtanh.pop %v540
    %v605 = vtanh.pop %v541
    %v606 = vtanh.pop %v542
    %v607 = vtanh.pop %v543
    %v608 = vtanh.pop %v544
    %v609 = vtanh.pop %v545
    %v610 = vtanh.pop %v546
    %v611 = vtanh.pop %v547
    %v612 = vtanh.pop %v548
    %v613 = vtanh.pop %v549
    %v614 = vtanh.pop %v550
    %v615 = vtanh.pop %v551
    %v616 = vtanh.pop %v552
    %v617 = vtanh.pop %v553
    %v618 = vtanh.pop %v554
    %v619 = vtanh.pop %v555
    %v620 = vtanh.pop %v556
    %v621 = vtanh.pop %v557
    %v622 = vtanh.pop %v558
    %v623 = vtanh.pop %v559
    %v624 = vtanh.pop %v560
    %v625 = vtanh.pop %v561
    %v626 = vtanh.pop %v562
    %v627 = vtanh.pop %v563
    %v628 = vtanh.pop %v564
    %v629 = vtanh.pop %v565
    %v630 = vtanh.pop %v566
    %v631 = vtanh.pop %v567
    %v632 = vtanh.pop %v568
    %v633 = vtanh.pop %v569
    %v634 = vtanh.pop %v570
    %v635 = vtanh.pop %v571
    %v636 = vtanh.pop %v572
    %v637 = vtanh.pop %v573
    %v638 = vtanh.pop %v574
    %v639 = vtanh.pop %v575
    %v640 = vtanh.pop %v576
    %v641 = vtanh.pop %v577
    %v642 = vtanh.pop %v578
    %v643 = vtanh.pop %v579
    %v644 = vtanh.pop %v580
    %v645 = vtanh.pop %v581
    %v646 = vtanh.pop %v582
    %v647 = vtanh.pop %v583
    %v648 = vtanh.pop %v584
    %v649 = vtanh.pop %v585
    %v650 = vtanh.pop %v586
    %v651 = vtanh.pop %v587
    %v652 = vtanh.pop %v588
    %v653 = vtanh.pop %v589
    %v654 = vtanh.pop %v590
    %v655 = vtanh.pop %v591
    %v656 = vtanh.pop %v592
    %v657 = vtanh.pop %v593
    %v658 = vtanh.pop %v594
    %v659 = vtanh.pop %v595
    %v660 = vmul.f32 %v596, 0.5
    %v661 = vmul.f32 %v597, 0.5
    %v662 = vmul.f32 %v598, 0.5
    %v663 = vmul.f32 %v599, 0.5
    %v664 = vmul.f32 %v600, 0.5
    %v665 = vmul.f32 %v601, 0.5
    %v666 = vmul.f32 %v602, 0.5
    %v667 = vmul.f32 %v603, 0.5
    %v668 = vmul.f32 %v604, 0.5
    %v669 = vmul.f32 %v605, 0.5
    %v670 = vmul.f32 %v606, 0.5
    %v671 = vmul.f32 %v607, 0.5
    %v672 = vmul.f32 %v608, 0.5
    %v673 = vmul.f32 %v609, 0.5
    %v674 = vmul.f32 %v610, 0.5
    %v675 = vmul.f32 %v611, 0.5
    %v676 = vmul.f32 %v612, 0.5
    %v677 = vmul.f32 %v613, 0.5
    %v678 = vmul.f32 %v614, 0.5
    %v679 = vmul.f32 %v615, 0.5
    %v680 = vmul.f32 %v616, 0.5
    %v681 = vmul.f32 %v617, 0.5
    %v682 = vmul.f32 %v618, 0.5
    %v683 = vmul.f32 %v619, 0.5
    %v684 = vmul.f32 %v620, 0.5
    %v685 = vmul.f32 %v621, 0.5
    %v686 = vmul.f32 %v622, 0.5
    %v687 = vmul.f32 %v623, 0.5
    %v688 = vmul.f32 %v624, 0.5
    %v689 = vmul.f32 %v625, 0.5
    %v690 = vmul.f32 %v626, 0.5
    %v691 = vmul.f32 %v627, 0.5
    %v692 = vmul.f32 %v628, 0.5
    %v693 = vmul.f32 %v629, 0.5
    %v694 = vmul.f32 %v630, 0.5
    %v695 = vmul.f32 %v631, 0.5
    %v696 = vmul.f32 %v632, 0.5
    %v697 = vmul.f32 %v633, 0.5
    %v698 = vmul.f32 %v634, 0.5
    %v699 = vmul.f32 %v635, 0.5
    %v700 = vmul.f32 %v636, 0.5
    %v701 = vmul.f32 %v637, 0.5
    %v702 = vmul.f32 %v638, 0.5
    %v703 = vmul.f32 %v639, 0.5
    %v704 = vmul.f32 %v640, 0.5
    %v705 = vmul.f32 %v641, 0.5
    %v706 = vmul.f32 %v642, 0.5
    %v707 = vmul.f32 %v643, 0.5
    %v708 = vmul.f32 %v644, 0.5
    %v709 = vmul.f32 %v645, 0.5
    %v710 = vmul.f32 %v646, 0.5
    %v711 = vmul.f32 %v647, 0.5
    %v712 = vmul.f32 %v648, 0.5
    %v713 = vmul.f32 %v649, 0.5
    %v714 = vmul.f32 %v650, 0.5
    %v715 = vmul.f32 %v651, 0.5
    %v716 = vmul.f32 %v652, 0.5
    %v717 = vmul.f32 %v653, 0.5
    %v718 = vmul.f32 %v654, 0.5
    %v719 = vmul.f32 %v655, 0.5
    %v720 = vmul.f32 %v656, 0.5
    %v721 = vmul.f32 %v657, 0.5
    %v722 = vmul.f32 %v658, 0.5
    %v723 = vmul.f32 %v659, 0.5
    %v724 = vadd.f32 %v660, 0.5
    %v725 = vadd.f32 %v661, 0.5
    %v726 = vadd.f32 %v662, 0.5
    %v727 = vadd.f32 %v663, 0.5
    %v728 = vadd.f32 %v664, 0.5
    %v729 = vadd.f32 %v665, 0.5
    %v730 = vadd.f32 %v666, 0.5
    %v731 = vadd.f32 %v667, 0.5
    %v732 = vadd.f32 %v668, 0.5
    %v733 = vadd.f32 %v669, 0.5
    %v734 = vadd.f32 %v670, 0.5
    %v735 = vadd.f32 %v671, 0.5
    %v736 = vadd.f32 %v672, 0.5
    %v737 = vadd.f32 %v673, 0.5
    %v738 = vadd.f32 %v674, 0.5
    %v739 = vadd.f32 %v675, 0.5
    %v740 = vadd.f32 %v676, 0.5
    %v741 = vadd.f32 %v677, 0.5
    %v742 = vadd.f32 %v678, 0.5
    %v743 = vadd.f32 %v679, 0.5
    %v744 = vadd.f32 %v680, 0.5
    %v745 = vadd.f32 %v681, 0.5
    %v746 = vadd.f32 %v682, 0.5
    %v747 = vadd.f32 %v683, 0.5
    %v748 = vadd.f32 %v684, 0.5
    %v749 = vadd.f32 %v685, 0.5
    %v750 = vadd.f32 %v686, 0.5
    %v751 = vadd.f32 %v687, 0.5
    %v752 = vadd.f32 %v688, 0.5
    %v753 = vadd.f32 %v689, 0.5
    %v754 = vadd.f32 %v690, 0.5
    %v755 = vadd.f32 %v691, 0.5
    %v756 = vadd.f32 %v692, 0.5
    %v757 = vadd.f32 %v693, 0.5
    %v758 = vadd.f32 %v694, 0.5
    %v759 = vadd.f32 %v695, 0.5
    %v760 = vadd.f32 %v696, 0.5
    %v761 = vadd.f32 %v697, 0.5
    %v762 = vadd.f32 %v698, 0.5
    %v763 = vadd.f32 %v699, 0.5
    %v764 = vadd.f32 %v700, 0.5
    %v765 = vadd.f32 %v701, 0.5
    %v766 = vadd.f32 %v702, 0.5
    %v767 = vadd.f32 %v703, 0.5
    %v768 = vadd.f32 %v704, 0.5
    %v769 = vadd.f32 %v705, 0.5
    %v770 = vadd.f32 %v706, 0.5
    %v771 = vadd.f32 %v707, 0.5
    %v772 = vadd.f32 %v708, 0.5
    %v773 = vadd.f32 %v709, 0.5
    %v774 = vadd.f32 %v710, 0.5
    %v775 = vadd.f32 %v711, 0.5
    %v776 = vadd.f32 %v712, 0.5
    %v777 = vadd.f32 %v713, 0.5
    %v778 = vadd.f32 %v714, 0.5
    %v779 = vadd.f32 %v715, 0.5
    %v780 = vadd.f32 %v716, 0.5
    %v781 = vadd.f32 %v717, 0.5
    %v782 = vadd.f32 %v718, 0.5
    %v783 = vadd.f32 %v719, 0.5
    %v784 = vadd.f32 %v720, 0.5
    %v785 = vadd.f32 %v721, 0.5
    %v786 = vadd.f32 %v722, 0.5
    %v787 = vadd.f32 %v723, 0.5
    %v788 = vmul.f32 %v373, %v724
    %v789 = vmul.f32 %v375, %v725
    %v790 = vmul.f32 %v378, %v726
    %v791 = vmul.f32 %v380, %v727
    %v792 = vmul.f32 %v383, %v728
    %v793 = vmul.f32 %v385, %v729
    %v794 = vmul.f32 %v388, %v730
    %v795 = vmul.f32 %v390, %v731
    %v796 = vmul.f32 %v393, %v732
    %v797 = vmul.f32 %v395, %v733
    %v798 = vmul.f32 %v398, %v734
    %v799 = vmul.f32 %v400, %v735
    %v800 = vmul.f32 %v403, %v736
    %v801 = vmul.f32 %v405, %v737
    %v802 = vmul.f32 %v408, %v738
    %v803 = vmul.f32 %v410, %v739
    %v804 = vmul.f32 %v413, %v740
    %v805 = vmul.f32 %v415, %v741
    %v806 = vmul.f32 %v418, %v742
    %v807 = vmul.f32 %v420, %v743
    %v808 = vmul.f32 %v423, %v744
    %v809 = vmul.f32 %v425, %v745
    %v810 = vmul.f32 %v428, %v746
    %v811 = vmul.f32 %v430, %v747
    %v812 = vmul.f32 %v433, %v748
    %v813 = vmul.f32 %v435, %v749
    %v814 = vmul.f32 %v438, %v750
    %v815 = vmul.f32 %v440, %v751
    %v816 = vmul.f32 %v443, %v752
    %v817 = vmul.f32 %v445, %v753
    %v818 = vmul.f32 %v448, %v754
    %v819 = vmul.f32 %v450, %v755
    %v820 = vmul.f32 %v453, %v756
    %v821 = vmul.f32 %v455, %v757
    %v822 = vmul.f32 %v458, %v758
    %v823 = vmul.f32 %v460, %v759
    %v824 = vmul.f32 %v463, %v760
    %v825 = vmul.f32 %v465, %v761
    %v826 = vmul.f32 %v468, %v762
    %v827 = vmul.f32 %v470, %v763
    %v828 = vmul.f32 %v473, %v764
    %v829 = vmul.f32 %v475, %v765
    %v830 = vmul.f32 %v478, %v766
    %v831 = vmul.f32 %v480, %v767
    %v832 = vmul.f32 %v483, %v768
    %v833 = vmul.f32 %v485, %v769
    %v834 = vmul.f32 %v488, %v770
    %v835 = vmul.f32 %v490, %v771
    %v836 = vmul.f32 %v493, %v772
    %v837 = vmul.f32 %v495, %v773
    %v838 = vmul.f32 %v498, %v774
    %v839 = vmul.f32 %v500, %v775
    %v840 = vmul.f32 %v503, %v776
    %v841 = vmul.f32 %v505, %v777
    %v842 = vmul.f32 %v508, %v778
    %v843 = vmul.f32 %v510, %v779
    %v844 = vmul.f32 %v513, %v780
    %v845 = vmul.f32 %v515, %v781
    %v846 = vmul.f32 %v518, %v782
    %v847 = vmul.f32 %v520, %v783
    %v848 = vmul.f32 %v523, %v784
    %v849 = vmul.f32 %v525, %v785
    %v850 = vmul.f32 %v528, %v786
    %v851 = vmul.f32 %v530, %v787
    %v852 = vpack.c.bf16 %v788, %v788
    %v853 = vpack.c.bf16 %v789, %v789
    %v854 = vpack.c.bf16 %v790, %v790
    %v855 = vpack.c.bf16 %v791, %v791
    %v856 = vpack.c.bf16 %v792, %v792
    %v857 = vpack.c.bf16 %v793, %v793
    %v858 = vpack.c.bf16 %v794, %v794
    %v859 = vpack.c.bf16 %v795, %v795
    %v860 = vpack.c.bf16 %v796, %v796
    %v861 = vpack.c.bf16 %v797, %v797
    %v862 = vpack.c.bf16 %v798, %v798
    %v863 = vpack.c.bf16 %v799, %v799
    %v864 = vpack.c.bf16 %v800, %v800
    %v865 = vpack.c.bf16 %v801, %v801
    %v866 = vpack.c.bf16 %v802, %v802
    %v867 = vpack.c.bf16 %v803, %v803
    %v868 = vpack.c.bf16 %v804, %v804
    %v869 = vpack.c.bf16 %v805, %v805
    %v870 = vpack.c.bf16 %v806, %v806
    %v871 = vpack.c.bf16 %v807, %v807
    %v872 = vpack.c.bf16 %v808, %v808
    %v873 = vpack.c.bf16 %v809, %v809
    %v874 = vpack.c.bf16 %v810, %v810
    %v875 = vpack.c.bf16 %v811, %v811
    %v876 = vpack.c.bf16 %v812, %v812
    %v877 = vpack.c.bf16 %v813, %v813
    %v878 = vpack.c.bf16 %v814, %v814
    %v879 = vpack.c.bf16 %v815, %v815
    %v880 = vpack.c.bf16 %v816, %v816
    %v881 = vpack.c.bf16 %v817, %v817
    %v882 = vpack.c.bf16 %v818, %v818
    %v883 = vpack.c.bf16 %v819, %v819
    %v884 = vpack.c.bf16 %v820, %v820
    %v885 = vpack.c.bf16 %v821, %v821
    %v886 = vpack.c.bf16 %v822, %v822
    %v887 = vpack.c.bf16 %v823, %v823
    %v888 = vpack.c.bf16 %v824, %v824
    %v889 = vpack.c.bf16 %v825, %v825
    %v890 = vpack.c.bf16 %v826, %v826
    %v891 = vpack.c.bf16 %v827, %v827
    %v892 = vpack.c.bf16 %v828, %v828
    %v893 = vpack.c.bf16 %v829, %v829
    %v894 = vpack.c.bf16 %v830, %v830
    %v895 = vpack.c.bf16 %v831, %v831
    %v896 = vpack.c.bf16 %v832, %v832
    %v897 = vpack.c.bf16 %v833, %v833
    %v898 = vpack.c.bf16 %v834, %v834
    %v899 = vpack.c.bf16 %v835, %v835
    %v900 = vpack.c.bf16 %v836, %v836
    %v901 = vpack.c.bf16 %v837, %v837
    %v902 = vpack.c.bf16 %v838, %v838
    %v903 = vpack.c.bf16 %v839, %v839
    %v904 = vpack.c.bf16 %v840, %v840
    %v905 = vpack.c.bf16 %v841, %v841
    %v906 = vpack.c.bf16 %v842, %v842
    %v907 = vpack.c.bf16 %v843, %v843
    %v908 = vpack.c.bf16 %v844, %v844
    %v909 = vpack.c.bf16 %v845, %v845
    %v910 = vpack.c.bf16 %v846, %v846
    %v911 = vpack.c.bf16 %v847, %v847
    %v912 = vpack.c.bf16 %v848, %v848
    %v913 = vpack.c.bf16 %v849, %v849
    %v914 = vpack.c.bf16 %v850, %v850
    %v915 = vpack.c.bf16 %v851, %v851
    %916 = vst [vmem:[#allocation2] sm:$0xf] %v852
    %917 = vst [vmem:[#allocation2 + $0x4] sm:$0xf] %v853
    %918 = vst [vmem:[#allocation2 + $0x8] sm:$0xf] %v854
    %919 = vst [vmem:[#allocation2 + $0xc] sm:$0xf] %v855
    %920 = vst [vmem:[#allocation2 + $0x10] sm:$0xf] %v856
    %921 = vst [vmem:[#allocation2 + $0x14] sm:$0xf] %v857
    %922 = vst [vmem:[#allocation2 + $0x18] sm:$0xf] %v858
    %923 = vst [vmem:[#allocation2 + $0x1c] sm:$0xf] %v859
    %924 = vst [vmem:[#allocation2 + $0x20] sm:$0xf] %v860
    %925 = vst [vmem:[#allocation2 + $0x24] sm:$0xf] %v861
    %926 = vst [vmem:[#allocation2 + $0x28] sm:$0xf] %v862
    %927 = vst [vmem:[#allocation2 + $0x2c] sm:$0xf] %v863
    %928 = vst [vmem:[#allocation2 + $0x30] sm:$0xf] %v864
    %929 = vst [vmem:[#allocation2 + $0x34] sm:$0xf] %v865
    %930 = vst [vmem:[#allocation2 + $0x38] sm:$0xf] %v866
    %931 = vst [vmem:[#allocation2 + $0x3c] sm:$0xf] %v867
    %932 = vst [vmem:[#allocation2 + $0x40] sm:$0xf] %v868
    %933 = vst [vmem:[#allocation2 + $0x44] sm:$0xf] %v869
    %934 = vst [vmem:[#allocation2 + $0x48] sm:$0xf] %v870
    %935 = vst [vmem:[#allocation2 + $0x4c] sm:$0xf] %v871
    %936 = vst [vmem:[#allocation2 + $0x50] sm:$0xf] %v872
    %937 = vst [vmem:[#allocation2 + $0x54] sm:$0xf] %v873
    %938 = vst [vmem:[#allocation2 + $0x58] sm:$0xf] %v874
    %939 = vst [vmem:[#allocation2 + $0x5c] sm:$0xf] %v875
    %940 = vst [vmem:[#allocation2 + $0x60] sm:$0xf] %v876
    %941 = vst [vmem:[#allocation2 + $0x64] sm:$0xf] %v877
    %942 = vst [vmem:[#allocation2 + $0x68] sm:$0xf] %v878
    %943 = vst [vmem:[#allocation2 + $0x6c] sm:$0xf] %v879
    %944 = vst [vmem:[#allocation2 + $0x70] sm:$0xf] %v880
    %945 = vst [vmem:[#allocation2 + $0x74] sm:$0xf] %v881
    %946 = vst [vmem:[#allocation2 + $0x78] sm:$0xf] %v882
    %947 = vst [vmem:[#allocation2 + $0x7c] sm:$0xf] %v883
    %948 = vst [vmem:[#allocation2 + $0x80] sm:$0xf] %v884
    %949 = vst [vmem:[#allocation2 + $0x84] sm:$0xf] %v885
    %950 = vst [vmem:[#allocation2 + $0x88] sm:$0xf] %v886
    %951 = vst [vmem:[#allocation2 + $0x8c] sm:$0xf] %v887
    %952 = vst [vmem:[#allocation2 + $0x90] sm:$0xf] %v888
    %953 = vst [vmem:[#allocation2 + $0x94] sm:$0xf] %v889
    %954 = vst [vmem:[#allocation2 + $0x98] sm:$0xf] %v890
    %955 = vst [vmem:[#allocation2 + $0x9c] sm:$0xf] %v891
    %956 = vst [vmem:[#allocation2 + $0xa0] sm:$0xf] %v892
    %957 = vst [vmem:[#allocation2 + $0xa4] sm:$0xf] %v893
    %958 = vst [vmem:[#allocation2 + $0xa8] sm:$0xf] %v894
    %959 = vst [vmem:[#allocation2 + $0xac] sm:$0xf] %v895
    %960 = vst [vmem:[#allocation2 + $0xb0] sm:$0xf] %v896
    %961 = vst [vmem:[#allocation2 + $0xb4] sm:$0xf] %v897
    %962 = vst [vmem:[#allocation2 + $0xb8] sm:$0xf] %v898
    %963 = vst [vmem:[#allocation2 + $0xbc] sm:$0xf] %v899
    %964 = vst [vmem:[#allocation2 + $0xc0] sm:$0xf] %v900
    %965 = vst [vmem:[#allocation2 + $0xc4] sm:$0xf] %v901
    %966 = vst [vmem:[#allocation2 + $0xc8] sm:$0xf] %v902
    %967 = vst [vmem:[#allocation2 + $0xcc] sm:$0xf] %v903
    %968 = vst [vmem:[#allocation2 + $0xd0] sm:$0xf] %v904
    %969 = vst [vmem:[#allocation2 + $0xd4] sm:$0xf] %v905
    %970 = vst [vmem:[#allocation2 + $0xd8] sm:$0xf] %v906
    %971 = vst [vmem:[#allocation2 + $0xdc] sm:$0xf] %v907
    %972 = vst [vmem:[#allocation2 + $0xe0] sm:$0xf] %v908
    %973 = vst [vmem:[#allocation2 + $0xe4] sm:$0xf] %v909
    %974 = vst [vmem:[#allocation2 + $0xe8] sm:$0xf] %v910
    %975 = vst [vmem:[#allocation2 + $0xec] sm:$0xf] %v911
    %976 = vst [vmem:[#allocation2 + $0xf0] sm:$0xf] %v912
    %977 = vst [vmem:[#allocation2 + $0xf4] sm:$0xf] %v913
    %978 = vst [vmem:[#allocation2 + $0xf8] sm:$0xf] %v914
    %979 = vst [vmem:[#allocation2 + $0xfc] sm:$0xf] %v915
    // Predicated region
    $region14: #{tpu_custom_call.1} parent=1 // pred_check
      _
    $region15: #{tpu_custom_call.1} parent=1 // pred_check_branch
      %981 = sbr.rel (0) target = $region17
    $region16: #{tpu_custom_call.1} parent=1 // pred_region
      %983 = vsyncadd [#allocation3], 0
      %s984 = sshll.u32 [#allocation2], 4
      %s985 = int_to_ptr.vmem [resolvable:$true] %s984
      %s986 = sshll.u32 %s3, 4
      %s987 = int_to_ptr.hbm [resolvable:$true] %s986
      %992 = dma.vmem_to_hbm [thread:$0]  %s985, 4096, %s987, [#allocation3], 64, 64, 4
    $region17: #{tpu_custom_call.1} parent=1 // pred_fallthru
      _
    // Predicated region
    $region18: #{tpu_custom_call.1} parent=1 // pred_check
      _
    $region19: #{tpu_custom_call.1} parent=1 // pred_check_branch
      %994 = sbr.rel (0) target = $region21
    $region20: #{tpu_custom_call.1} parent=1 // pred_region
      %996 = dma.done [#allocation3], 4096
    $region21: #{tpu_custom_call.1} parent=1 // pred_fallthru
      _
    %997 = vsyncpa [#allocation3], 1

</llo_original>
